<compile_context>
chip_gen: v7x
topology: tpu7x:2x2x1
jax: 0.10.0
libtpu: 0.0.40
codegen_flags: <defaults>
</compile_context>

<pallas_src>
import jax
import jax.numpy as jnp
from jax.experimental import pallas as pl
from jax.experimental.pallas import tpu as pltpu


def _cross_attn_kernel(q_ref, k_ref, v_ref, wqk_ref, ssum_ref, rexp_ref, wvb_ref, o_ref):
    # q_ref   : (TM, q_dim)
    # k_ref   : (TM, num_kv*kv_dim)        flattened, lane-dense
    # v_ref   : (TM, num_kv*kv_dim)
    # wqk_ref : (q_dim, num_kv*kv_dim)     scale * (wq.T @ wk), tiled over kv slots
    # ssum_ref: (num_kv*kv_dim, num_kv)    0/1 segment-sum selector
    # rexp_ref: (num_kv, num_kv*kv_dim)    0/1 expansion selector (= ssum.T)
    # wvb_ref : (num_kv*kv_dim, A_pad)     wv.T (zero-padded to A_pad) tiled over kv slots
    # o_ref   : (TM, A_pad)
    f32 = jnp.float32
    # NOTE: for bf16 deployments keep the big matmul operands in bf16 (the .astype
    # below is a no-op for the f32 inputs used here; accumulation is f32 either way).
    q = q_ref[...].astype(f32)
    k = k_ref[...].astype(f32)
    v = v_ref[...].astype(f32)

    # Per-kv-slot-tiled projected query: qw[m, n*kv+j] = scale * sum_i q[m,i] Wqk[i,j]
    qw = jnp.dot(q, wqk_ref[...], preferred_element_type=f32)            # (TM, KD)  MXU

    # scores[m, n] = sum_j qw[m, n*kv+j] * key[m, n, j]  (segment-sum on the MXU)
    prod = qw * k                                                        # VPU, lane-dense
    scores = jnp.dot(prod, ssum_ref[...], preferred_element_type=f32)    # (TM, num_kv) MXU

    # softmax over num_kv
    scores = scores - jnp.max(scores, axis=-1, keepdims=True)
    e = jnp.exp(scores)
    denom = jnp.sum(e, axis=-1, keepdims=True)
    inv = pl.reciprocal(denom, approx=True)        # EUP slot
    inv = inv * (2.0 - denom * inv)                # one Newton step -> ~f32 accuracy
    attn = e * inv                                                        # (TM, num_kv)

    # out[m, a] = sum_{n,j} attn[m,n] * value[m,n,j] * wv[a,j]
    attn_e = jnp.dot(attn, rexp_ref[...], preferred_element_type=f32)     # (TM, KD)  MXU
    ctx = attn_e * v                                                      # VPU, lane-dense
    out = jnp.dot(ctx, wvb_ref[...], preferred_element_type=f32)          # (TM, A_pad) MXU

    o_ref[...] = out.astype(o_ref.dtype)


def cross_attention_block(query, key, value, wq, wk, wv, *, attention_dim=64, tm=1024):
    """Pallas implementation of CrossAttentionBlock.forward.

    wq: (attention_dim, q_dim), wk/wv: (attention_dim, kv_dim)  (PyTorch Linear layout,
    bias=False as in the module).
    """
    original_ndim = query.ndim
    if query.ndim == 3:
        B, N_seg, q_dim = query.shape
        q2 = query.reshape(B * N_seg, q_dim)
    else:
        B, q_dim = query.shape
        N_seg = 1
        q2 = query

    M = q2.shape[0]
    M_kv, num_kv, kv_dim = key.shape
    assert M_kv == M, "kernel implements the B_kv == B*N_seg (no-broadcast) case"

    A = attention_dim
    scale = float(A) ** (-0.5)
    KD = num_kv * kv_dim
    A_pad = ((A + 127) // 128) * 128  # lane-dense (unmasked) output stores

    # Lane-dense flattened K/V: (M, num_kv*kv_dim).
    k2 = key.reshape(M, KD)
    v2 = value.reshape(M, KD)

    # Precompute fused weights / selectors once on the host side (f32).
    f32 = jnp.float32
    wq32, wk32, wv32 = wq.astype(f32), wk.astype(f32), wv.astype(f32)
    wqk = (wq32.T @ wk32) * scale                     # (q_dim, kv_dim), scale folded in
    wqk_tiled = jnp.tile(wqk, (1, num_kv))            # (q_dim, KD)
    wv_t = wv32.T                                     # (kv_dim, A)
    if A_pad != A:
        wv_t = jnp.pad(wv_t, ((0, 0), (0, A_pad - A)))
    wv_big = jnp.tile(wv_t, (num_kv, 1))              # (KD, A_pad)
    s_sum = jnp.repeat(jnp.eye(num_kv, dtype=f32), kv_dim, axis=0)   # (KD, num_kv)
    r_exp = s_sum.T                                                   # (num_kv, KD)

    # Large batch tile (sweepable); clamp to the (8-aligned) problem size. No host pad:
    # ragged last block is handled by the pipeline (OOB writes are clipped).
    tm = max(8, min(int(tm), ((M + 7) // 8) * 8))
    grid = (pl.cdiv(M, tm),)

    out = pl.pallas_call(
        _cross_attn_kernel,
        out_shape=jax.ShapeDtypeStruct((M, A_pad), query.dtype),
        grid_spec=pltpu.PrefetchScalarGridSpec(
            num_scalar_prefetch=0,
            grid=grid,
            in_specs=[
                pl.BlockSpec((tm, q_dim), lambda i: (i, 0)),
                pl.BlockSpec((tm, KD), lambda i: (i, 0)),
                pl.BlockSpec((tm, KD), lambda i: (i, 0)),
                pl.BlockSpec((q_dim, KD), lambda i: (0, 0)),
                pl.BlockSpec((KD, num_kv), lambda i: (0, 0)),
                pl.BlockSpec((num_kv, KD), lambda i: (0, 0)),
                pl.BlockSpec((KD, A_pad), lambda i: (0, 0)),
            ],
            out_specs=pl.BlockSpec((tm, A_pad), lambda i: (i, 0)),
        ),
        compiler_params=pltpu.CompilerParams(
            dimension_semantics=("parallel",),
        ),
    )(q2, k2, v2, wqk_tiled, s_sum, r_exp, wv_big)

    if A_pad != A:
        out = out[:, :A]
    if original_ndim == 3 and N_seg > 1:
        out = out.reshape(B, N_seg, A)
    return out


def _reference(query, key, value, wq, wk, wv, attention_dim):
    # Pure-JAX mirror of the PyTorch forward.
    if query.ndim == 3:
        B, N_seg, q_dim = query.shape
        q2 = query.reshape(B * N_seg, q_dim)
    else:
        B, q_dim = query.shape
        N_seg = 1
        q2 = query
    scale = float(attention_dim) ** (-0.5)
    Q = (q2 @ wq.T)[:, None, :]                       # (M, 1, A)
    K = jnp.einsum("bnk,ak->bna", key, wk)            # (M, num_kv, A)
    V = jnp.einsum("bnk,ak->bna", value, wv)          # (M, num_kv, A)
    scores = jnp.einsum("bqa,bna->bqn", Q, K) * scale
    attn = jax.nn.softmax(scores, axis=-1)
    out = jnp.einsum("bqn,bna->bqa", attn, V)[:, 0, :]
    if N_seg > 1:
        out = out.reshape(B, N_seg, -1)
    return out


if __name__ == "__main__":
    # Small shapes consistent with the module.
    B, N_seg = 2, 4
    q_dim, kv_dim = 16, 24
    num_kv = 8
    attention_dim = 64
    M = B * N_seg

    key0 = jax.random.PRNGKey(0)
    k_q, k_k, k_v, k_wq, k_wk, k_wv = jax.random.split(key0, 6)

    query = jax.random.normal(k_q, (B, N_seg, q_dim), dtype=jnp.float32)
    key_in = jax.random.normal(k_k, (M, num_kv, kv_dim), dtype=jnp.float32)
    value_in = jax.random.normal(k_v, (M, num_kv, kv_dim), dtype=jnp.float32)

    # Deterministic param init, PyTorch Linear-style uniform(-1/sqrt(in), 1/sqrt(in)).
    def init_linear(rng, out_d, in_d):
        bound = 1.0 / (in_d ** 0.5)
        return jax.random.uniform(rng, (out_d, in_d), jnp.float32, -bound, bound)

    wq = init_linear(k_wq, attention_dim, q_dim)
    wk = init_linear(k_wk, attention_dim, kv_dim)
    wv = init_linear(k_wv, attention_dim, kv_dim)

    out = cross_attention_block(query, key_in, value_in, wq, wk, wv,
                                attention_dim=attention_dim)
    out = jax.block_until_ready(out)

    ref = _reference(query, key_in, value_in, wq, wk, wv, attention_dim)
    assert out.shape == (B, N_seg, attention_dim), out.shape
    assert jnp.allclose(out, ref, atol=5e-4, rtol=5e-4), float(jnp.abs(out - ref).max())

    print("KERNEL_OK")
</pallas_src>

<mosaic_0001>
module attributes {stable_mosaic.version = 11 : i64} {
  func.func @_cross_attn_kernel(%arg0: i32, %arg1: memref<8x16xf32, #tpu.memory_space<vmem>>, %arg2: memref<8x192xf32, #tpu.memory_space<vmem>>, %arg3: memref<8x192xf32, #tpu.memory_space<vmem>>, %arg4: memref<16x192xf32, #tpu.memory_space<vmem>>, %arg5: memref<192x8xf32, #tpu.memory_space<vmem>>, %arg6: memref<8x192xf32, #tpu.memory_space<vmem>>, %arg7: memref<192x128xf32, #tpu.memory_space<vmem>>, %arg8: memref<8x128xf32, #tpu.memory_space<vmem>>) attributes {dimension_semantics = [#tpu.dimension_semantics<parallel>], iteration_bounds = array<i64: 1>, scalar_prefetch = 0 : i64, scratch_operands = 0 : i64, tpu.core_type = #tpu.core_type<tc>, window_params = [{transform_indices = @transform_0, window_bounds = array<i64: 8, 16>}, {transform_indices = @transform_1, window_bounds = array<i64: 8, 192>}, {transform_indices = @transform_2, window_bounds = array<i64: 8, 192>}, {pipeline_mode = #tpu.pipeline_mode<synchronous>, transform_indices = @transform_3, window_bounds = array<i64: 16, 192>}, {pipeline_mode = #tpu.pipeline_mode<synchronous>, transform_indices = @transform_4, window_bounds = array<i64: 192, 8>}, {pipeline_mode = #tpu.pipeline_mode<synchronous>, transform_indices = @transform_5, window_bounds = array<i64: 8, 192>}, {pipeline_mode = #tpu.pipeline_mode<synchronous>, transform_indices = @transform_6, window_bounds = array<i64: 192, 128>}, {transform_indices = @transform_7, window_bounds = array<i64: 8, 128>}]} {
    %c0 = arith.constant 0 : index
    %c0_0 = arith.constant 0 : index
    %0 = vector.load %arg1[%c0, %c0_0] : memref<8x16xf32, #tpu.memory_space<vmem>>, vector<8x16xf32>
    %c0_1 = arith.constant 0 : index
    %c0_2 = arith.constant 0 : index
    %1 = vector.load %arg2[%c0_1, %c0_2] : memref<8x192xf32, #tpu.memory_space<vmem>>, vector<8x192xf32>
    %c0_3 = arith.constant 0 : index
    %c0_4 = arith.constant 0 : index
    %2 = vector.load %arg3[%c0_3, %c0_4] : memref<8x192xf32, #tpu.memory_space<vmem>>, vector<8x192xf32>
    %c0_5 = arith.constant 0 : index
    %c0_6 = arith.constant 0 : index
    %3 = vector.load %arg4[%c0_5, %c0_6] : memref<16x192xf32, #tpu.memory_space<vmem>>, vector<16x192xf32>
    %cst = arith.constant dense<0.000000e+00> : vector<8x192xf32>
    %4 = tpu.matmul %0, %3, %cst {dimension_numbers = #tpu.dot_dimension_numbers<[1], [0], [0], [1], [0, 0, 1, 1], [], []>} : vector<8x16xf32>, vector<16x192xf32>, vector<8x192xf32> -> vector<8x192xf32>
    %5 = arith.mulf %4, %1 : vector<8x192xf32>
    %c0_7 = arith.constant 0 : index
    %c0_8 = arith.constant 0 : index
    %6 = vector.load %arg5[%c0_7, %c0_8] : memref<192x8xf32, #tpu.memory_space<vmem>>, vector<192x8xf32>
    %cst_9 = arith.constant dense<0.000000e+00> : vector<8x8xf32>
    %7 = tpu.matmul %5, %6, %cst_9 {dimension_numbers = #tpu.dot_dimension_numbers<[1], [0], [0], [1], [0, 0, 1, 1], [], []>} : vector<8x192xf32>, vector<192x8xf32>, vector<8x8xf32> -> vector<8x8xf32>
    %cst_10 = arith.constant dense<0xFF800000> : vector<8xf32>
    %8 = vector.multi_reduction <maximumf>, %7, %cst_10 [1] : vector<8x8xf32> to vector<8xf32>
    %9 = vector.shape_cast %8 : vector<8xf32> to vector<8x1xf32>
    %10 = vector.broadcast %9 : vector<8x1xf32> to vector<8x8xf32>
    %11 = arith.subf %7, %10 : vector<8x8xf32>
    %12 = math.exp %11 : vector<8x8xf32>
    %cst_11 = arith.constant dense<0.000000e+00> : vector<8xf32>
    %13 = vector.multi_reduction <add>, %12, %cst_11 [1] : vector<8x8xf32> to vector<8xf32>
    %14 = vector.shape_cast %13 : vector<8xf32> to vector<8x1xf32>
    %15 = tpu.reciprocal %14 {approx = true} : vector<8x1xf32> -> vector<8x1xf32>
    %16 = arith.mulf %14, %15 : vector<8x1xf32>
    %cst_12 = arith.constant 2.000000e+00 : f32
    %17 = vector.broadcast %cst_12 : f32 to vector<8x1xf32>
    %18 = arith.subf %17, %16 : vector<8x1xf32>
    %19 = arith.mulf %15, %18 : vector<8x1xf32>
    %20 = vector.broadcast %19 : vector<8x1xf32> to vector<8x8xf32>
    %21 = arith.mulf %12, %20 : vector<8x8xf32>
    %c0_13 = arith.constant 0 : index
    %c0_14 = arith.constant 0 : index
    %22 = vector.load %arg6[%c0_13, %c0_14] : memref<8x192xf32, #tpu.memory_space<vmem>>, vector<8x192xf32>
    %cst_15 = arith.constant dense<0.000000e+00> : vector<8x192xf32>
    %23 = tpu.matmul %21, %22, %cst_15 {dimension_numbers = #tpu.dot_dimension_numbers<[1], [0], [0], [1], [0, 0, 1, 1], [], []>} : vector<8x8xf32>, vector<8x192xf32>, vector<8x192xf32> -> vector<8x192xf32>
    %24 = arith.mulf %23, %2 : vector<8x192xf32>
    %c0_16 = arith.constant 0 : index
    %c0_17 = arith.constant 0 : index
    %25 = vector.load %arg7[%c0_16, %c0_17] : memref<192x128xf32, #tpu.memory_space<vmem>>, vector<192x128xf32>
    %cst_18 = arith.constant dense<0.000000e+00> : vector<8x128xf32>
    %26 = tpu.matmul %24, %25, %cst_18 {dimension_numbers = #tpu.dot_dimension_numbers<[1], [0], [0], [1], [0, 0, 1, 1], [], []>} : vector<8x192xf32>, vector<192x128xf32>, vector<8x128xf32> -> vector<8x128xf32>
    %c0_19 = arith.constant 0 : index
    %c0_20 = arith.constant 0 : index
    %27 = vector.load %arg8[%c0_19, %c0_20] : memref<8x128xf32, #tpu.memory_space<vmem>>, vector<8x128xf32>
    tpu.vector_store %arg8[%c0_19, %c0_20], %26 {strides = array<i32>} : memref<8x128xf32, #tpu.memory_space<vmem>>, vector<8x128xf32>,
    return
  }
  func.func @transform_0(%arg0: i32) -> (i32, i32) {
    %c0_i32 = arith.constant 0 : i32
    %c0_i32_0 = arith.constant 0 : i32
    return %arg0, %c0_i32 : i32, i32
  }
  func.func @transform_1(%arg0: i32) -> (i32, i32) {
    %c0_i32 = arith.constant 0 : i32
    %c0_i32_0 = arith.constant 0 : i32
    return %arg0, %c0_i32 : i32, i32
  }
  func.func @transform_2(%arg0: i32) -> (i32, i32) {
    %c0_i32 = arith.constant 0 : i32
    %c0_i32_0 = arith.constant 0 : i32
    return %arg0, %c0_i32 : i32, i32
  }
  func.func @transform_3(%arg0: i32) -> (i32, i32) {
    %c0_i32 = arith.constant 0 : i32
    %c0_i32_0 = arith.constant 0 : i32
    %c0_i32_1 = arith.constant 0 : i32
    return %c0_i32, %c0_i32_0 : i32, i32
  }
  func.func @transform_4(%arg0: i32) -> (i32, i32) {
    %c0_i32 = arith.constant 0 : i32
    %c0_i32_0 = arith.constant 0 : i32
    %c0_i32_1 = arith.constant 0 : i32
    return %c0_i32, %c0_i32_0 : i32, i32
  }
  func.func @transform_5(%arg0: i32) -> (i32, i32) {
    %c0_i32 = arith.constant 0 : i32
    %c0_i32_0 = arith.constant 0 : i32
    %c0_i32_1 = arith.constant 0 : i32
    return %c0_i32, %c0_i32_0 : i32, i32
  }
  func.func @transform_6(%arg0: i32) -> (i32, i32) {
    %c0_i32 = arith.constant 0 : i32
    %c0_i32_0 = arith.constant 0 : i32
    %c0_i32_1 = arith.constant 0 : i32
    return %c0_i32, %c0_i32_0 : i32, i32
  }
  func.func @transform_7(%arg0: i32) -> (i32, i32) {
    %c0_i32 = arith.constant 0 : i32
    %c0_i32_0 = arith.constant 0 : i32
    return %arg0, %c0_i32 : i32, i32
  }
}

</mosaic_0001>

<llo_original>
// kernel: tpu_custom_call.1
$region0: #{tpu_custom_call.1}
  #allocation0 [shape = 'u32[]', space=smem, size = 0x4, offset = 0x4, fixed_abs, tag = 'smem constant byte address 0x4 - core index']
  #allocation1 [shape = 'u32[144,128]{1,0:T(1,128)}', space=vmem, size = 0x12000, scoped, tag = 'internal scratch']
  %s0 = inlined_call_operand.hbm [shape: f32[8,16], index: 0, kind: input, shape index: {}]
  %s1 = inlined_call_operand.hbm [shape: f32[8,192], index: 1, kind: input, shape index: {}]
  %s2 = inlined_call_operand.hbm [shape: f32[8,192], index: 2, kind: input, shape index: {}]
  %s3 = inlined_call_operand.vmem [shape: f32[16,192], index: 3, kind: input, shape index: {}]
  %s4 = inlined_call_operand.vmem [shape: f32[192,8], index: 4, kind: input, shape index: {}]
  %s5 = inlined_call_operand.hbm [shape: f32[8,192], index: 5, kind: input, shape index: {}]
  %s6 = inlined_call_operand.vmem [shape: f32[192,128], index: 6, kind: input, shape index: {}]
  %s7 = inlined_call_operand.hbm [shape: f32[8,128], index: 7, kind: output, shape index: {}]
  %s8 = sld [smem:[#allocation0]]
  $region54: #{tpu_custom_call.1} parent=0
    _
  %s10 = ssub.s32 1, %s8
  %s11 = scalar_select 0, %s10, %s8
  $region1: #{tpu_custom_call.1} parent=0
    #allocation2 [shape = 'u8[4096]{0}', space=vmem, size = 0x1000, scoped, tag = 'input window, operand 0, single buffered']
    #allocation3 [shape = 's32[1]{0}', space=sflag, size = 0x4, scoped, tag = 'scoped memory for tpu_custom_call.1']
    #allocation4 [shape = 's32[1]{0}', space=sflag, size = 0x4, scoped, tag = 'scoped memory for tpu_custom_call.1']
    #allocation5 [shape = 'u8[8192]{0}', space=vmem, size = 0x2000, scoped, tag = 'input window, operand 1, single buffered']
    #allocation6 [shape = 's32[1]{0}', space=sflag, size = 0x4, scoped, tag = 'scoped memory for tpu_custom_call.1']
    #allocation7 [shape = 'u8[8192]{0}', space=vmem, size = 0x2000, scoped, tag = 'input window, operand 2, single buffered']
    #allocation8 [shape = 'u8[8192]{0}', space=vmem, size = 0x2000, scoped, tag = 'input window, operand 5, single buffered']
    #allocation9 [shape = 's32[1]{0}', space=sflag, size = 0x4, scoped, tag = 'scoped memory for tpu_custom_call.1']
    #allocation10 [shape = 'u8[4096]{0}', space=vmem, size = 0x1000, scoped, tag = 'output window, operand 0, single buffered']
    %12 = vsyncpa [#allocation3], 0
    %13 = vsyncpa [#allocation6], 0
    %14 = vsyncpa [#allocation9], 0
    %15 = vsyncpa [#allocation4], 0
    // Predicated region
    $region2: #{tpu_custom_call.1} parent=1 // pred_check
      _
    $region3: #{tpu_custom_call.1} parent=1 // pred_check_branch
      %17 = sbr.rel (0) target = $region5
    $region4: #{tpu_custom_call.1} parent=1 // pred_region
      %s19 = ssub.s32 128, 128
      %20 = vsyncadd [#allocation3], %s19
      %s22 = sshll.u32 [#allocation2], 4
      %s23 = int_to_ptr.vmem [resolvable:$true] %s22
      %25 = dma.hbm_to_vmem [thread:$0]  %s0, 128, %s23, [#allocation3]
    $region5: #{tpu_custom_call.1} parent=1 // pred_fallthru
      _
    // Predicated region
    $region6: #{tpu_custom_call.1} parent=1 // pred_check
      _
    $region7: #{tpu_custom_call.1} parent=1 // pred_check_branch
      %27 = sbr.rel (0) target = $region9
    $region8: #{tpu_custom_call.1} parent=1 // pred_region
      %s29 = ssub.s32 256, 256
      %30 = vsyncadd [#allocation6], %s29
      %s32 = sshll.u32 [#allocation5], 4
      %s33 = int_to_ptr.vmem [resolvable:$true] %s32
      %35 = dma.hbm_to_vmem [thread:$0]  %s1, 256, %s33, [#allocation6]
    $region9: #{tpu_custom_call.1} parent=1 // pred_fallthru
      _
    // Predicated region
    $region10: #{tpu_custom_call.1} parent=1 // pred_check
      _
    $region11: #{tpu_custom_call.1} parent=1 // pred_check_branch
      %37 = sbr.rel (0) target = $region13
    $region12: #{tpu_custom_call.1} parent=1 // pred_region
      %s39 = ssub.s32 256, 256
      %40 = vsyncadd [#allocation6], %s39
      %s42 = sshll.u32 [#allocation7], 4
      %s43 = int_to_ptr.vmem [resolvable:$true] %s42
      %45 = dma.hbm_to_vmem [thread:$0]  %s2, 256, %s43, [#allocation6]
    $region13: #{tpu_custom_call.1} parent=1 // pred_fallthru
      _
    // Predicated region
    $region14: #{tpu_custom_call.1} parent=1 // pred_check
      _
    $region15: #{tpu_custom_call.1} parent=1 // pred_check_branch
      %47 = sbr.rel (0) target = $region17
    $region16: #{tpu_custom_call.1} parent=1 // pred_region
      _
    $region17: #{tpu_custom_call.1} parent=1 // pred_fallthru
      _
    // Predicated region
    $region18: #{tpu_custom_call.1} parent=1 // pred_check
      _
    $region19: #{tpu_custom_call.1} parent=1 // pred_check_branch
      %49 = sbr.rel (0) target = $region21
    $region20: #{tpu_custom_call.1} parent=1 // pred_region
      _
    $region21: #{tpu_custom_call.1} parent=1 // pred_fallthru
      _
    // Predicated region
    $region22: #{tpu_custom_call.1} parent=1 // pred_check
      _
    $region23: #{tpu_custom_call.1} parent=1 // pred_check_branch
      %51 = sbr.rel (0) target = $region25
    $region24: #{tpu_custom_call.1} parent=1 // pred_region
      %s53 = ssub.s32 256, 256
      %54 = vsyncadd [#allocation9], %s53
      %s56 = sshll.u32 [#allocation8], 4
      %s57 = int_to_ptr.vmem [resolvable:$true] %s56
      %59 = dma.hbm_to_vmem [thread:$0]  %s5, 256, %s57, [#allocation9]
    $region25: #{tpu_custom_call.1} parent=1 // pred_fallthru
      _
    // Predicated region
    $region26: #{tpu_custom_call.1} parent=1 // pred_check
      _
    $region27: #{tpu_custom_call.1} parent=1 // pred_check_branch
      %61 = sbr.rel (0) target = $region29
    $region28: #{tpu_custom_call.1} parent=1 // pred_region
      _
    $region29: #{tpu_custom_call.1} parent=1 // pred_fallthru
      _
    // Predicated region
    $region30: #{tpu_custom_call.1} parent=1 // pred_check
      _
    $region31: #{tpu_custom_call.1} parent=1 // pred_check_branch
      %63 = sbr.rel (0) target = $region33
    $region32: #{tpu_custom_call.1} parent=1 // pred_region
      %64 = dma.done [#allocation3], 128
    $region33: #{tpu_custom_call.1} parent=1 // pred_fallthru
      _
    // Predicated region
    $region34: #{tpu_custom_call.1} parent=1 // pred_check
      _
    $region35: #{tpu_custom_call.1} parent=1 // pred_check_branch
      %66 = sbr.rel (0) target = $region37
    $region36: #{tpu_custom_call.1} parent=1 // pred_region
      %67 = dma.done [#allocation6], 256
    $region37: #{tpu_custom_call.1} parent=1 // pred_fallthru
      _
    // Predicated region
    $region38: #{tpu_custom_call.1} parent=1 // pred_check
      _
    $region39: #{tpu_custom_call.1} parent=1 // pred_check_branch
      %69 = sbr.rel (0) target = $region41
    $region40: #{tpu_custom_call.1} parent=1 // pred_region
      %70 = dma.done [#allocation6], 256
    $region41: #{tpu_custom_call.1} parent=1 // pred_fallthru
      _
    // Predicated region
    $region42: #{tpu_custom_call.1} parent=1 // pred_check
      _
    $region43: #{tpu_custom_call.1} parent=1 // pred_check_branch
      %72 = sbr.rel (0) target = $region45
    $region44: #{tpu_custom_call.1} parent=1 // pred_region
      %73 = dma.done [#allocation9], 256
    $region45: #{tpu_custom_call.1} parent=1 // pred_fallthru
      _
    %v74 = vld [vmem:[#allocation2] sm:$0xff]
    %v75 = vld [vmem:[#allocation5] sm:$0xff]
    %v76 = vld [vmem:[#allocation5 + $0x8] sm:$0xff]
    %v77 = vld [vmem:[#allocation7] sm:$0xff]
    %v78 = vld [vmem:[#allocation7 + $0x8] sm:$0xff]
    %v79 = vld [vmem:[%s3] sm:$0xff]
    %v80 = vld [vmem:[%s3 + $0x8] sm:$0xff]
    %v81 = vld [vmem:[%s3 + $0x10] sm:$0xff]
    %v82 = vld [vmem:[%s3 + $0x18] sm:$0xff]
    %vm83 = vcmask 130048
    %v85 = vsel %vm83, %v74, 0
    %87 = vmatprep.subr.mxu0 %v80
    %88 = vmatpush1.msra.mxu0 %v79
    %89 = vmatprep.subr.mxu0 %v82
    %90 = vmatpush1.msra.mxu0 %v81
    %91 = vmatprep.subr.mxu0 0.0
    %92 = vmatpush1.msra.mxu0 0.0
    %93 = vmatprep.subr.mxu0 0.0
    %94 = vmatpush1.msra.mxu0 0.0
    %95 = vmatprep.subr.mxu0 0.0
    %96 = vmatpush1.msra.mxu0 0.0
    %97 = vmatprep.subr.mxu0 0.0
    %98 = vmatpush1.msra.mxu0 0.0
    %99 = vmatprep.subr.mxu0 0.0
    %100 = vmatpush1.msra.mxu0 0.0
    %101 = vmatprep.subr.mxu0 0.0
    %102 = vmatpush1.msra.mxu0 0.0
    %103 = vmatprep.subr.mxu0 0.0
    %104 = vmatpush1.msra.mxu0 0.0
    %105 = vmatprep.subr.mxu0 0.0
    %106 = vmatpush1.msra.mxu0 0.0
    %107 = vmatprep.subr.mxu0 0.0
    %108 = vmatpush1.msra.mxu0 0.0
    %109 = vmatprep.subr.mxu0 0.0
    %110 = vmatpush1.msra.mxu0 0.0
    %111 = vmatprep.subr.mxu0 0.0
    %112 = vmatpush1.msra.mxu0 0.0
    %113 = vmatprep.subr.mxu0 0.0
    %114 = vmatpush1.msra.mxu0 0.0
    %115 = vmatprep.subr.mxu0 0.0
    %116 = vmatpush1.msra.mxu0 0.0
    %117 = vmatprep.subr.mxu0 0.0
    %118 = vmatpush1.msra.mxu0 0.0
    %119 = vmatprep.subr.mxu0 0.0
    %120 = vmatpush1.msra.mxu0 0.0
    %121 = vmatprep.subr.mxu0 0.0
    %122 = vmatpush1.msra.mxu0 0.0
    %123 = vmatprep.subr.mxu0 0.0
    %124 = vmatpush1.msra.mxu0 0.0
    %125 = vmatprep.subr.mxu0 0.0
    %126 = vmatpush1.msra.mxu0 0.0
    %127 = vmatprep.subr.mxu0 0.0
    %128 = vmatpush1.msra.mxu0 0.0
    %129 = vmatprep.subr.mxu0 0.0
    %130 = vmatpush1.msra.mxu0 0.0
    %131 = vmatprep.subr.mxu0 0.0
    %132 = vmatpush1.msra.mxu0 0.0
    %133 = vmatprep.subr.mxu0 0.0
    %134 = vmatpush1.msra.mxu0 0.0
    %135 = vmatprep.subr.mxu0 0.0
    %136 = vmatpush1.msra.mxu0 0.0
    %137 = vmatprep.subr.mxu0 0.0
    %138 = vmatpush1.msra.mxu0 0.0
    %139 = vmatprep.subr.mxu0 0.0
    %140 = vmatpush1.msra.mxu0 0.0
    %141 = vmatprep.subr.mxu0 0.0
    %142 = vmatpush1.msra.mxu0 0.0
    %143 = vmatprep.subr.mxu0 0.0
    %144 = vmatpush1.msra.mxu0 0.0
    %145 = vmatprep.subr.mxu0 0.0
    %146 = vmatpush1.msra.mxu0 0.0
    %147 = vmatprep.subr.mxu0 0.0
    %148 = vmatpush1.msra.mxu0 0.0
    %149 = vmatprep.subr.mxu0 0.0
    %150 = vmatpush1.msra.mxu0 0.0
    %151 = vmatprep.mubr.f32.mxu0 0.0
    %152 = vmatmul.mubr.f32.gmra.mrb[0].mxu0 %v85
    %v153 = vpop.f32.mrb[0].mxu0
    %v154 = vadd.f32 0.0, %v153
    %v155 = vpop.f32.mrb[0].mxu0
    %v156 = vadd.f32 0.0, %v155
    %157 = vdwg.mxu0
    %v158 = vmul.f32 %v154, %v75
    %v159 = vmul.f32 %v156, %v76
    %v160 = vld [vmem:[%s4] sm:$0xff]
    %v161 = vld [vmem:[%s4 + $0x8] sm:$0xff]
    %v162 = vld [vmem:[%s4 + $0x10] sm:$0xff]
    %v163 = vld [vmem:[%s4 + $0x18] sm:$0xff]
    %v164 = vld [vmem:[%s4 + $0x20] sm:$0xff]
    %v165 = vld [vmem:[%s4 + $0x28] sm:$0xff]
    %v166 = vld [vmem:[%s4 + $0x30] sm:$0xff]
    %v167 = vld [vmem:[%s4 + $0x38] sm:$0xff]
    %v168 = vld [vmem:[%s4 + $0x40] sm:$0xff]
    %v169 = vld [vmem:[%s4 + $0x48] sm:$0xff]
    %v170 = vld [vmem:[%s4 + $0x50] sm:$0xff]
    %v171 = vld [vmem:[%s4 + $0x58] sm:$0xff]
    %v172 = vld [vmem:[%s4 + $0x60] sm:$0xff]
    %v173 = vld [vmem:[%s4 + $0x68] sm:$0xff]
    %v174 = vld [vmem:[%s4 + $0x70] sm:$0xff]
    %v175 = vld [vmem:[%s4 + $0x78] sm:$0xff]
    %v176 = vld [vmem:[%s4 + $0x80] sm:$0xff]
    %v177 = vld [vmem:[%s4 + $0x88] sm:$0xff]
    %v178 = vld [vmem:[%s4 + $0x90] sm:$0xff]
    %v179 = vld [vmem:[%s4 + $0x98] sm:$0xff]
    %v180 = vld [vmem:[%s4 + $0xa0] sm:$0xff]
    %v181 = vld [vmem:[%s4 + $0xa8] sm:$0xff]
    %v182 = vld [vmem:[%s4 + $0xb0] sm:$0xff]
    %v183 = vld [vmem:[%s4 + $0xb8] sm:$0xff]
    %vm184 = vcmask 523264
    %v186 = vsel %vm184, %v159, 0
    %188 = vmatprep.subr.mxu0 0.0
    %189 = vmatpush1.msra.mxu0 %v160
    %190 = vmatprep.subr.mxu0 0.0
    %191 = vmatpush1.msra.mxu0 %v161
    %192 = vmatprep.subr.mxu0 0.0
    %193 = vmatpush1.msra.mxu0 %v162
    %194 = vmatprep.subr.mxu0 0.0
    %195 = vmatpush1.msra.mxu0 %v163
    %196 = vmatprep.subr.mxu0 0.0
    %197 = vmatpush1.msra.mxu0 %v164
    %198 = vmatprep.subr.mxu0 0.0
    %199 = vmatpush1.msra.mxu0 %v165
    %200 = vmatprep.subr.mxu0 0.0
    %201 = vmatpush1.msra.mxu0 %v166
    %202 = vmatprep.subr.mxu0 0.0
    %203 = vmatpush1.msra.mxu0 %v167
    %204 = vmatprep.subr.mxu0 0.0
    %205 = vmatpush1.msra.mxu0 %v168
    %206 = vmatprep.subr.mxu0 0.0
    %207 = vmatpush1.msra.mxu0 %v169
    %208 = vmatprep.subr.mxu0 0.0
    %209 = vmatpush1.msra.mxu0 %v170
    %210 = vmatprep.subr.mxu0 0.0
    %211 = vmatpush1.msra.mxu0 %v171
    %212 = vmatprep.subr.mxu0 0.0
    %213 = vmatpush1.msra.mxu0 %v172
    %214 = vmatprep.subr.mxu0 0.0
    %215 = vmatpush1.msra.mxu0 %v173
    %216 = vmatprep.subr.mxu0 0.0
    %217 = vmatpush1.msra.mxu0 %v174
    %218 = vmatprep.subr.mxu0 0.0
    %219 = vmatpush1.msra.mxu0 %v175
    %220 = vmatprep.subr.mxu0 0.0
    %221 = vmatpush1.msra.mxu0 %v176
    %222 = vmatprep.subr.mxu0 0.0
    %223 = vmatpush1.msra.mxu0 %v177
    %224 = vmatprep.subr.mxu0 0.0
    %225 = vmatpush1.msra.mxu0 %v178
    %226 = vmatprep.subr.mxu0 0.0
    %227 = vmatpush1.msra.mxu0 %v179
    %228 = vmatprep.subr.mxu0 0.0
    %229 = vmatpush1.msra.mxu0 %v180
    %230 = vmatprep.subr.mxu0 0.0
    %231 = vmatpush1.msra.mxu0 %v181
    %232 = vmatprep.subr.mxu0 0.0
    %233 = vmatpush1.msra.mxu0 %v182
    %234 = vmatprep.subr.mxu0 0.0
    %235 = vmatpush1.msra.mxu0 %v183
    %236 = vmatprep.subr.mxu0 0.0
    %237 = vmatpush1.msra.mxu0 0.0
    %238 = vmatprep.subr.mxu0 0.0
    %239 = vmatpush1.msra.mxu0 0.0
    %240 = vmatprep.subr.mxu0 0.0
    %241 = vmatpush1.msra.mxu0 0.0
    %242 = vmatprep.subr.mxu0 0.0
    %243 = vmatpush1.msra.mxu0 0.0
    %244 = vmatprep.subr.mxu0 0.0
    %245 = vmatpush1.msra.mxu0 0.0
    %246 = vmatprep.subr.mxu0 0.0
    %247 = vmatpush1.msra.mxu0 0.0
    %248 = vmatprep.subr.mxu0 0.0
    %249 = vmatpush1.msra.mxu0 0.0
    %250 = vmatprep.subr.mxu0 0.0
    %251 = vmatpush1.msra.mxu0 0.0
    %252 = vmatprep.mubr.f32.mxu0 %v186
    %253 = vmatmul.mubr.f32.gmra.mrb[0].mxu0 %v158
    %v254 = vpop.f32.mrb[0].mxu0
    %v255 = vadd.f32 0.0, %v254
    %v256 = vpop.f32.mrb[0].mxu0
    %257 = vdwg.mxu0
    %vm258 = vcmask 64512
    %v259 = vsel %vm258, %v255, -inf
    %260 = vmax.xlane.f32.xlu0 %v259
    %v261 = vpop.xlane.xlu0 %260
    %v262 = vsub.f32 %v255, %v261
    %v263 = vmul.f32 %v262, 1.442695
    %v264 = vpow.pop %v263
    %v265 = vsel %vm258, %v264, 0.0
    %266 = vadd.xlane.f32.xlu0 %v265
    %v267 = vpop.xlane.xlu0 %266
    %v268 = vrcp.pop %v267
    %v269 = vmul.f32 %v267, %v268
    %v270 = vsub.f32 2.0, %v269
    %v271 = vmul.f32 %v268, %v270
    %v272 = vmul.f32 %v264, %v271
    %v273 = vld [vmem:[#allocation8] sm:$0xff]
    %v274 = vld [vmem:[#allocation8 + $0x8] sm:$0xff]
    %v276 = vsel %vm258, %v272, 0
    %278 = vmatprep.subr.mxu0 %v274
    %279 = vmatpush1.msra.mxu0 %v273
    %280 = vmatprep.subr.mxu0 0.0
    %281 = vmatpush1.msra.mxu0 0.0
    %282 = vmatprep.subr.mxu0 0.0
    %283 = vmatpush1.msra.mxu0 0.0
    %284 = vmatprep.subr.mxu0 0.0
    %285 = vmatpush1.msra.mxu0 0.0
    %286 = vmatprep.subr.mxu0 0.0
    %287 = vmatpush1.msra.mxu0 0.0
    %288 = vmatprep.subr.mxu0 0.0
    %289 = vmatpush1.msra.mxu0 0.0
    %290 = vmatprep.subr.mxu0 0.0
    %291 = vmatpush1.msra.mxu0 0.0
    %292 = vmatprep.subr.mxu0 0.0
    %293 = vmatpush1.msra.mxu0 0.0
    %294 = vmatprep.subr.mxu0 0.0
    %295 = vmatpush1.msra.mxu0 0.0
    %296 = vmatprep.subr.mxu0 0.0
    %297 = vmatpush1.msra.mxu0 0.0
    %298 = vmatprep.subr.mxu0 0.0
    %299 = vmatpush1.msra.mxu0 0.0
    %300 = vmatprep.subr.mxu0 0.0
    %301 = vmatpush1.msra.mxu0 0.0
    %302 = vmatprep.subr.mxu0 0.0
    %303 = vmatpush1.msra.mxu0 0.0
    %304 = vmatprep.subr.mxu0 0.0
    %305 = vmatpush1.msra.mxu0 0.0
    %306 = vmatprep.subr.mxu0 0.0
    %307 = vmatpush1.msra.mxu0 0.0
    %308 = vmatprep.subr.mxu0 0.0
    %309 = vmatpush1.msra.mxu0 0.0
    %310 = vmatprep.subr.mxu0 0.0
    %311 = vmatpush1.msra.mxu0 0.0
    %312 = vmatprep.subr.mxu0 0.0
    %313 = vmatpush1.msra.mxu0 0.0
    %314 = vmatprep.subr.mxu0 0.0
    %315 = vmatpush1.msra.mxu0 0.0
    %316 = vmatprep.subr.mxu0 0.0
    %317 = vmatpush1.msra.mxu0 0.0
    %318 = vmatprep.subr.mxu0 0.0
    %319 = vmatpush1.msra.mxu0 0.0
    %320 = vmatprep.subr.mxu0 0.0
    %321 = vmatpush1.msra.mxu0 0.0
    %322 = vmatprep.subr.mxu0 0.0
    %323 = vmatpush1.msra.mxu0 0.0
    %324 = vmatprep.subr.mxu0 0.0
    %325 = vmatpush1.msra.mxu0 0.0
    %326 = vmatprep.subr.mxu0 0.0
    %327 = vmatpush1.msra.mxu0 0.0
    %328 = vmatprep.subr.mxu0 0.0
    %329 = vmatpush1.msra.mxu0 0.0
    %330 = vmatprep.subr.mxu0 0.0
    %331 = vmatpush1.msra.mxu0 0.0
    %332 = vmatprep.subr.mxu0 0.0
    %333 = vmatpush1.msra.mxu0 0.0
    %334 = vmatprep.subr.mxu0 0.0
    %335 = vmatpush1.msra.mxu0 0.0
    %336 = vmatprep.subr.mxu0 0.0
    %337 = vmatpush1.msra.mxu0 0.0
    %338 = vmatprep.subr.mxu0 0.0
    %339 = vmatpush1.msra.mxu0 0.0
    %340 = vmatprep.subr.mxu0 0.0
    %341 = vmatpush1.msra.mxu0 0.0
    %342 = vmatprep.mubr.f32.mxu0 0.0
    %343 = vmatmul.mubr.f32.gmra.mrb[0].mxu0 %v276
    %v344 = vpop.f32.mrb[0].mxu0
    %v345 = vadd.f32 0.0, %v344
    %v346 = vpop.f32.mrb[0].mxu0
    %v347 = vadd.f32 0.0, %v346
    %348 = vdwg.mxu0
    %v349 = vmul.f32 %v345, %v77
    %v350 = vmul.f32 %v347, %v78
    %v351 = vld [vmem:[%s6] sm:$0xff]
    %v352 = vld [vmem:[%s6 + $0x8] sm:$0xff]
    %v353 = vld [vmem:[%s6 + $0x10] sm:$0xff]
    %v354 = vld [vmem:[%s6 + $0x18] sm:$0xff]
    %v355 = vld [vmem:[%s6 + $0x20] sm:$0xff]
    %v356 = vld [vmem:[%s6 + $0x28] sm:$0xff]
    %v357 = vld [vmem:[%s6 + $0x30] sm:$0xff]
    %v358 = vld [vmem:[%s6 + $0x38] sm:$0xff]
    %v359 = vld [vmem:[%s6 + $0x40] sm:$0xff]
    %v360 = vld [vmem:[%s6 + $0x48] sm:$0xff]
    %v361 = vld [vmem:[%s6 + $0x50] sm:$0xff]
    %v362 = vld [vmem:[%s6 + $0x58] sm:$0xff]
    %v363 = vld [vmem:[%s6 + $0x60] sm:$0xff]
    %v364 = vld [vmem:[%s6 + $0x68] sm:$0xff]
    %v365 = vld [vmem:[%s6 + $0x70] sm:$0xff]
    %v366 = vld [vmem:[%s6 + $0x78] sm:$0xff]
    %v367 = vld [vmem:[%s6 + $0x80] sm:$0xff]
    %v368 = vld [vmem:[%s6 + $0x88] sm:$0xff]
    %v369 = vld [vmem:[%s6 + $0x90] sm:$0xff]
    %v370 = vld [vmem:[%s6 + $0x98] sm:$0xff]
    %v371 = vld [vmem:[%s6 + $0xa0] sm:$0xff]
    %v372 = vld [vmem:[%s6 + $0xa8] sm:$0xff]
    %v373 = vld [vmem:[%s6 + $0xb0] sm:$0xff]
    %v374 = vld [vmem:[%s6 + $0xb8] sm:$0xff]
    %v376 = vsel %vm184, %v350, 0
    %378 = vmatprep.subr.mxu0 0.0
    %379 = vmatpush1.msra.mxu0 %v351
    %380 = vmatprep.subr.mxu0 0.0
    %381 = vmatpush1.msra.mxu0 %v352
    %382 = vmatprep.subr.mxu0 0.0
    %383 = vmatpush1.msra.mxu0 %v353
    %384 = vmatprep.subr.mxu0 0.0
    %385 = vmatpush1.msra.mxu0 %v354
    %386 = vmatprep.subr.mxu0 0.0
    %387 = vmatpush1.msra.mxu0 %v355
    %388 = vmatprep.subr.mxu0 0.0
    %389 = vmatpush1.msra.mxu0 %v356
    %390 = vmatprep.subr.mxu0 0.0
    %391 = vmatpush1.msra.mxu0 %v357
    %392 = vmatprep.subr.mxu0 0.0
    %393 = vmatpush1.msra.mxu0 %v358
    %394 = vmatprep.subr.mxu0 0.0
    %395 = vmatpush1.msra.mxu0 %v359
    %396 = vmatprep.subr.mxu0 0.0
    %397 = vmatpush1.msra.mxu0 %v360
    %398 = vmatprep.subr.mxu0 0.0
    %399 = vmatpush1.msra.mxu0 %v361
    %400 = vmatprep.subr.mxu0 0.0
    %401 = vmatpush1.msra.mxu0 %v362
    %402 = vmatprep.subr.mxu0 0.0
    %403 = vmatpush1.msra.mxu0 %v363
    %404 = vmatprep.subr.mxu0 0.0
    %405 = vmatpush1.msra.mxu0 %v364
    %406 = vmatprep.subr.mxu0 0.0
    %407 = vmatpush1.msra.mxu0 %v365
    %408 = vmatprep.subr.mxu0 0.0
    %409 = vmatpush1.msra.mxu0 %v366
    %410 = vmatprep.subr.mxu0 0.0
    %411 = vmatpush1.msra.mxu0 %v367
    %412 = vmatprep.subr.mxu0 0.0
    %413 = vmatpush1.msra.mxu0 %v368
    %414 = vmatprep.subr.mxu0 0.0
    %415 = vmatpush1.msra.mxu0 %v369
    %416 = vmatprep.subr.mxu0 0.0
    %417 = vmatpush1.msra.mxu0 %v370
    %418 = vmatprep.subr.mxu0 0.0
    %419 = vmatpush1.msra.mxu0 %v371
    %420 = vmatprep.subr.mxu0 0.0
    %421 = vmatpush1.msra.mxu0 %v372
    %422 = vmatprep.subr.mxu0 0.0
    %423 = vmatpush1.msra.mxu0 %v373
    %424 = vmatprep.subr.mxu0 0.0
    %425 = vmatpush1.msra.mxu0 %v374
    %426 = vmatprep.subr.mxu0 0.0
    %427 = vmatpush1.msra.mxu0 0.0
    %428 = vmatprep.subr.mxu0 0.0
    %429 = vmatpush1.msra.mxu0 0.0
    %430 = vmatprep.subr.mxu0 0.0
    %431 = vmatpush1.msra.mxu0 0.0
    %432 = vmatprep.subr.mxu0 0.0
    %433 = vmatpush1.msra.mxu0 0.0
    %434 = vmatprep.subr.mxu0 0.0
    %435 = vmatpush1.msra.mxu0 0.0
    %436 = vmatprep.subr.mxu0 0.0
    %437 = vmatpush1.msra.mxu0 0.0
    %438 = vmatprep.subr.mxu0 0.0
    %439 = vmatpush1.msra.mxu0 0.0
    %440 = vmatprep.subr.mxu0 0.0
    %441 = vmatpush1.msra.mxu0 0.0
    %442 = vmatprep.mubr.f32.mxu0 %v376
    %443 = vmatmul.mubr.f32.gmra.mrb[0].mxu0 %v349
    %v444 = vpop.f32.mrb[0].mxu0
    %v445 = vadd.f32 0.0, %v444
    %v446 = vpop.f32.mrb[0].mxu0
    %447 = vdwg.mxu0
    %448 = vst [vmem:[#allocation10] sm:$0xff] %v445
    // Predicated region
    $region46: #{tpu_custom_call.1} parent=1 // pred_check
      _
    $region47: #{tpu_custom_call.1} parent=1 // pred_check_branch
      %450 = sbr.rel (0) target = $region49
    $region48: #{tpu_custom_call.1} parent=1 // pred_region
      %s452 = ssub.s32 128, 128
      %453 = vsyncadd [#allocation4], %s452
      %s455 = sshll.u32 [#allocation10], 4
      %s456 = int_to_ptr.vmem [resolvable:$true] %s455
      %458 = dma.vmem_to_hbm [thread:$0]  %s456, 128, %s7, [#allocation4]
    $region49: #{tpu_custom_call.1} parent=1 // pred_fallthru
      _
    // Predicated region
    $region50: #{tpu_custom_call.1} parent=1 // pred_check
      _
    $region51: #{tpu_custom_call.1} parent=1 // pred_check_branch
      %460 = sbr.rel (0) target = $region53
    $region52: #{tpu_custom_call.1} parent=1 // pred_region
      %461 = dma.done [#allocation4], 128
    $region53: #{tpu_custom_call.1} parent=1 // pred_fallthru
      _
    %462 = vsyncpa [#allocation3], 1
    %463 = vsyncpa [#allocation6], 1
    %464 = vsyncpa [#allocation9], 1
    %465 = vsyncpa [#allocation4], 1

</llo_original>
